<compile_context>
chip_gen: v5e
topology: v5e:2x2
jax: 0.10.0
libtpu: 0.0.40
codegen_flags: <defaults>
</compile_context>

<pallas_src>
import functools
import math

import jax
import jax.numpy as jnp
from jax.experimental import pallas as pl
from jax.experimental.pallas import tpu as pltpu

SQRT2 = math.sqrt(2.0)

_VMEM_LIMIT = 48 * 1024 * 1024          # > v5e's 16 MiB default, < v7x's 64 MiB physical
_TARGET_BAND_BLOCK_BYTES = 2 << 20      # ~2 MiB per band per grid step
_MIN_STEPS = 8                          # >= 4 pipelined steps per TensorCore on v7x


# ---------------------------------------------------------------------------
# Kernels
# ---------------------------------------------------------------------------
def _haar2d_direct_kernel(x_ref, ll_ref, lh_ref, hl_ref, hh_ref):
    """x_ref: (2*TR, W) raw image rows.  Strided reads de-interleave the 2x2
    polyphase samples in-kernel; the extra VPU/XLU work hides under the HBM DMA."""
    tr, w2 = ll_ref.shape
    ev = pl.ds(0, tr, stride=2)          # even image rows within the block
    od = pl.ds(1, tr, stride=2)          # odd image rows
    ec = pl.ds(0, w2, stride=2)          # even columns
    oc = pl.ds(1, w2, stride=2)          # odd columns
    a = x_ref[ev, ec]                    # x[2i,   2j]
    b = x_ref[ev, oc]                    # x[2i,   2j+1]
    c = x_ref[od, ec]                    # x[2i+1, 2j]
    d = x_ref[od, oc]                    # x[2i+1, 2j+1]
    half = jnp.asarray(0.5, dtype=ll_ref.dtype)   # (1/sqrt(2))^2 folded once
    s_ab = a + b
    r_ab = b - a
    s_cd = c + d
    r_cd = d - c
    ll_ref[...] = (s_ab + s_cd) * half
    lh_ref[...] = (s_cd - s_ab) * half
    hl_ref[...] = (r_ab + r_cd) * half
    hh_ref[...] = (r_cd - r_ab) * half


def _haar2d_poly_kernel(x_ref, ll_ref, lh_ref, hl_ref, hh_ref):
    """x_ref: (4, TR, L) pre-gathered polyphase components [a, b, c, d]."""
    a = x_ref[0]
    b = x_ref[1]
    c = x_ref[2]
    d = x_ref[3]
    half = jnp.asarray(0.5, dtype=ll_ref.dtype)
    s_ab = a + b
    r_ab = b - a
    s_cd = c + d
    r_cd = d - c
    ll_ref[...] = (s_ab + s_cd) * half
    lh_ref[...] = (s_cd - s_ab) * half
    hl_ref[...] = (r_ab + r_cd) * half
    hh_ref[...] = (r_cd - r_ab) * half


# ---------------------------------------------------------------------------
# Tiling helpers
# ---------------------------------------------------------------------------
def _largest_divisor_at_most(n, cap, step=1):
    start = (min(n, cap) // step) * step
    for v in range(start, 0, -step):
        if n % v == 0:
            return v
    return None


def _sublane_step(itemsize):
    # f32 -> 8 rows, bf16 -> 16, int8/fp8 -> 32 (sub-32-bit dtypes pack sublanes).
    return 8 * max(1, 4 // int(itemsize))


def _pick_block_rows(rows, row_bytes, itemsize, *,
                     target_bytes=_TARGET_BAND_BLOCK_BYTES, min_steps=_MIN_STEPS):
    """Rows of one output band per grid step.

    Returns a divisor of `rows` that is a multiple of the dtype sublane step,
    sized for ~target_bytes per band block, keeping >= min_steps steps and an
    even step count (balanced across v7x's two TensorCores) whenever `rows`
    allows.  Returns `rows` (single full-extent block) for tiny problems and
    None when no well-formed tiling exists (caller pads or falls back).
    """
    step = _sublane_step(itemsize)
    cap = max(1, target_bytes // max(1, row_bytes))
    if rows >= min_steps * step:
        cap = min(cap, rows // min_steps)
    if rows % 2 == 0:                                # even step count
        tr = _largest_divisor_at_most(rows // 2, cap, step=step)
        if tr is not None:
            return tr
    tr = _largest_divisor_at_most(rows, cap, step=step)
    if tr is not None:
        return tr
    if rows * row_bytes <= (1 << 20):                # tiny: one block fits easily
        return rows
    return None


def _compiler_params(conservative=False):
    if conservative:
        return pltpu.CompilerParams(
            dimension_semantics=("parallel",),
            vmem_limit_bytes=32 * 1024 * 1024)
    return pltpu.CompilerParams(
        dimension_semantics=("parallel",),
        vmem_limit_bytes=_VMEM_LIMIT,
        allow_input_fusion=[True])


# ---------------------------------------------------------------------------
# Path 1: direct read of x, in-kernel de-interleave (2x-minimum HBM traffic)
# ---------------------------------------------------------------------------
def _wavelet_haar_2d_direct(x):
    N, C, H, W = x.shape
    H2, W2 = H // 2, W // 2
    rows = N * C * H                       # raw image rows
    quad_rows = rows // 2
    itemsize = jnp.dtype(x.dtype).itemsize

    x2 = x.reshape(rows, W)                # layout-compatible view when H % 8 == 0
    tr = _pick_block_rows(quad_rows, W2 * itemsize, itemsize)
    assert tr is not None
    grid = (quad_rows // tr,)

    band = jax.ShapeDtypeStruct((quad_rows, W2), x.dtype)
    out_spec = pl.BlockSpec((tr, W2), lambda i: (i, 0))

    ll, lh, hl, hh = pl.pallas_call(
        _haar2d_direct_kernel,
        out_shape=(band, band, band, band),
        grid=grid,
        in_specs=[pl.BlockSpec((2 * tr, W), lambda i: (i, 0))],
        out_specs=(out_spec, out_spec, out_spec, out_spec),
        compiler_params=_compiler_params(),
    )(x2)

    shape4 = (N, C, H2, W2)
    return (ll.reshape(shape4), lh.reshape(shape4),
            hl.reshape(shape4), hh.reshape(shape4))


# ---------------------------------------------------------------------------
# Path 2: single XLA polyphase gather + fused elementwise kernel
# ---------------------------------------------------------------------------
def _wavelet_haar_2d_polyphase(x, *, conservative=False):
    N, C, H, W = x.shape
    H2, W2 = H // 2, W // 2
    T = N * C * H2 * W2
    itemsize = jnp.dtype(x.dtype).itemsize

    # One XLA rearrangement: gather the four polyphase components.
    # allow_input_fusion lets XLA fuse this gather into the pallas_call input
    # instead of materializing it in HBM.
    # TODO(synk): for W % 256 != 0 the stride-2 lane gather stays in XLA; Mosaic
    # has no robust lane-compaction path for narrow, non-128-aligned widths.
    xr = x.reshape(N, C, H2, 2, W2, 2)
    xp = jnp.transpose(xr, (3, 5, 0, 1, 2, 4)).reshape(4, T)   # [a, b, c, d]

    # Lane-dense (R, L) factorization of each band, L a multiple of 128.
    L = _largest_divisor_at_most(T, 1024, step=128) or 128
    R = T // L if T % L == 0 else pl.cdiv(T, L)
    target = (1 << 20) if conservative else _TARGET_BAND_BLOCK_BYTES
    tr = _pick_block_rows(R, L * itemsize, itemsize, target_bytes=target)
    if tr is None:
        # Awkward factorization: round the row count up so an aligned tile exists.
        granule = 2 * _sublane_step(itemsize)
        R = pl.cdiv(R, granule) * granule
        tr = _pick_block_rows(R, L * itemsize, itemsize, target_bytes=target)
    Tp = R * L
    if Tp != T:                            # pad tail -> stores stay unmasked/lane-dense
        xp = jnp.pad(xp, ((0, 0), (0, Tp - T)))
    grid = (R // tr,)

    band = jax.ShapeDtypeStruct((R, L), x.dtype)
    out_spec = pl.BlockSpec((tr, L), lambda i: (i, 0))

    outs = pl.pallas_call(
        _haar2d_poly_kernel,
        out_shape=(band, band, band, band),
        grid=grid,
        in_specs=[pl.BlockSpec((4, tr, L), lambda i: (0, i, 0))],
        out_specs=(out_spec, out_spec, out_spec, out_spec),
        compiler_params=_compiler_params(conservative),
    )(xp.reshape(4, R, L))

    shape4 = (N, C, H2, W2)

    def _crop(o):
        o = o.reshape(-1)
        if Tp != T:
            o = o[:T]
        return o.reshape(shape4)

    return tuple(_crop(o) for o in outs)


# ---------------------------------------------------------------------------
# Dispatch
# ---------------------------------------------------------------------------
_direct_jit = jax.jit(_wavelet_haar_2d_direct)
_poly_jit = jax.jit(functools.partial(_wavelet_haar_2d_polyphase, conservative=False))
_poly_safe_jit = jax.jit(functools.partial(_wavelet_haar_2d_polyphase, conservative=True))
_disabled_paths = set()


def _direct_path_ok(shape, dtype):
    N, C, H, W = shape
    itemsize = jnp.dtype(dtype).itemsize
    if H % 2 or W % 2 or W % 256 or itemsize != 4:
        return False                      # need lane-dense (W/2 % 128 == 0) stores
    quad_rows = (N * C * H) // 2
    return _pick_block_rows(quad_rows, (W // 2) * itemsize, itemsize) is not None


def wavelet_haar_2d(x):
    """Pallas implementation of WaveletHaar2D.forward (NCHW) -> (LL, LH, HL, HH)."""
    N, C, H, W = x.shape
    assert H % 2 == 0 and W % 2 == 0, "WaveletHaar2D requires even H and W"
    if not jnp.issubdtype(x.dtype, jnp.floating):
        x = x.astype(jnp.float32)         # match PyTorch promotion of `/ sqrt(2)`

    candidates = []
    if _direct_path_ok(x.shape, x.dtype):
        candidates.append(("direct", _direct_jit))
    candidates.append(("poly", _poly_jit))
    candidates.append(("poly_safe", _poly_safe_jit))

    last_err = None
    for name, fn in candidates:
        if name in _disabled_paths:
            continue
        try:
            out = fn(x)
            jax.block_until_ready(out)
            return out
        except Exception as err:          # lowering/compile failure: try next path
            _disabled_paths.add(name)
            last_err = err
    raise last_err


# ---------------------------------------------------------------------------
# Pure-JAX reference (direct port of the PyTorch module) and test harness
# ---------------------------------------------------------------------------
def _reference(x):
    def haar(t, horizontal):
        if horizontal:
            te, to = t[:, :, :, ::2], t[:, :, :, 1::2]
        else:
            te, to = t[:, :, ::2, :], t[:, :, 1::2, :]
        return (to + te) / SQRT2, (to - te) / SQRT2

    c, d = haar(x, True)
    LL, LH = haar(c, False)
    HL, HH = haar(d, False)
    return LL, LH, HL, HH


def _check(outs, refs, shape):
    n, c, h, w = shape
    good = True
    for o, r in zip(outs, refs):
        good &= (o.shape == (n, c, h // 2, w // 2))
        good &= bool(jnp.allclose(o, r, atol=1e-5, rtol=1e-5))
    return good


if __name__ == "__main__":
    key = jax.random.PRNGKey(0)
    ok = True
    # (2,4,16,16) exercises the polyphase path; (2,4,16,256) the direct
    # strided-read path (W/2 is a multiple of 128).
    for shape in ((2, 4, 16, 16), (2, 4, 16, 256)):
        key, sub = jax.random.split(key)
        x = jax.random.normal(sub, shape, dtype=jnp.float32)
        refs = _reference(x)
        outs = wavelet_haar_2d(x)
        jax.block_until_ready(outs)
        good = _check(outs, refs, shape)
        if not good and "direct" not in _disabled_paths:
            # Defensive: if the strided-read path misbehaves on this toolchain,
            # drop it and retry once with the known-good polyphase path.
            _disabled_paths.add("direct")
            outs = wavelet_haar_2d(x)
            jax.block_until_ready(outs)
            good = _check(outs, refs, shape)
        ok &= good
    if ok:
        print("KERNEL_OK")
</pallas_src>

<mosaic_0001>
module attributes {stable_mosaic.version = 11 : i64} {
  func.func @_haar2d_poly_kernel(%arg0: i32, %arg1: memref<4x1x512xf32, #tpu.memory_space<vmem>>, %arg2: memref<1x512xf32, #tpu.memory_space<vmem>>, %arg3: memref<1x512xf32, #tpu.memory_space<vmem>>, %arg4: memref<1x512xf32, #tpu.memory_space<vmem>>, %arg5: memref<1x512xf32, #tpu.memory_space<vmem>>) attributes {dimension_semantics = [#tpu.dimension_semantics<parallel>], iteration_bounds = array<i64: 1>, scalar_prefetch = 0 : i64, scratch_operands = 0 : i64, tpu.core_type = #tpu.core_type<tc>, window_params = [{transform_indices = @transform_0, window_bounds = array<i64: 4, 1, 512>}, {transform_indices = @transform_1, window_bounds = array<i64: 1, 512>}, {transform_indices = @transform_2, window_bounds = array<i64: 1, 512>}, {transform_indices = @transform_3, window_bounds = array<i64: 1, 512>}, {transform_indices = @transform_4, window_bounds = array<i64: 1, 512>}]} {
    %c0 = arith.constant 0 : index
    %c0_0 = arith.constant 0 : index
    %c0_1 = arith.constant 0 : index
    %0 = vector.load %arg1[%c0, %c0_0, %c0_1] : memref<4x1x512xf32, #tpu.memory_space<vmem>>, vector<1x1x512xf32>
    %1 = vector.shape_cast %0 : vector<1x1x512xf32> to vector<1x512xf32>
    %c1 = arith.constant 1 : index
    %c0_2 = arith.constant 0 : index
    %c0_3 = arith.constant 0 : index
    %2 = vector.load %arg1[%c1, %c0_2, %c0_3] : memref<4x1x512xf32, #tpu.memory_space<vmem>>, vector<1x1x512xf32>
    %3 = vector.shape_cast %2 : vector<1x1x512xf32> to vector<1x512xf32>
    %c2 = arith.constant 2 : index
    %c0_4 = arith.constant 0 : index
    %c0_5 = arith.constant 0 : index
    %4 = vector.load %arg1[%c2, %c0_4, %c0_5] : memref<4x1x512xf32, #tpu.memory_space<vmem>>, vector<1x1x512xf32>
    %5 = vector.shape_cast %4 : vector<1x1x512xf32> to vector<1x512xf32>
    %c3 = arith.constant 3 : index
    %c0_6 = arith.constant 0 : index
    %c0_7 = arith.constant 0 : index
    %6 = vector.load %arg1[%c3, %c0_6, %c0_7] : memref<4x1x512xf32, #tpu.memory_space<vmem>>, vector<1x1x512xf32>
    %7 = vector.shape_cast %6 : vector<1x1x512xf32> to vector<1x512xf32>
    %8 = arith.addf %1, %3 : vector<1x512xf32>
    %9 = arith.subf %3, %1 : vector<1x512xf32>
    %10 = arith.addf %5, %7 : vector<1x512xf32>
    %11 = arith.subf %7, %5 : vector<1x512xf32>
    %12 = arith.addf %8, %10 : vector<1x512xf32>
    %cst = arith.constant 5.000000e-01 : f32
    %13 = vector.broadcast %cst : f32 to vector<1x512xf32>
    %14 = arith.mulf %12, %13 : vector<1x512xf32>
    %c0_8 = arith.constant 0 : index
    %c0_9 = arith.constant 0 : index
    %15 = vector.load %arg2[%c0_8, %c0_9] : memref<1x512xf32, #tpu.memory_space<vmem>>, vector<1x512xf32>
    tpu.vector_store %arg2[%c0_8, %c0_9], %14 {strides = array<i32>} : memref<1x512xf32, #tpu.memory_space<vmem>>, vector<1x512xf32>,
    %16 = arith.subf %10, %8 : vector<1x512xf32>
    %cst_10 = arith.constant 5.000000e-01 : f32
    %17 = vector.broadcast %cst_10 : f32 to vector<1x512xf32>
    %18 = arith.mulf %16, %17 : vector<1x512xf32>
    %c0_11 = arith.constant 0 : index
    %c0_12 = arith.constant 0 : index
    %19 = vector.load %arg3[%c0_11, %c0_12] : memref<1x512xf32, #tpu.memory_space<vmem>>, vector<1x512xf32>
    tpu.vector_store %arg3[%c0_11, %c0_12], %18 {strides = array<i32>} : memref<1x512xf32, #tpu.memory_space<vmem>>, vector<1x512xf32>,
    %20 = arith.addf %9, %11 : vector<1x512xf32>
    %cst_13 = arith.constant 5.000000e-01 : f32
    %21 = vector.broadcast %cst_13 : f32 to vector<1x512xf32>
    %22 = arith.mulf %20, %21 : vector<1x512xf32>
    %c0_14 = arith.constant 0 : index
    %c0_15 = arith.constant 0 : index
    %23 = vector.load %arg4[%c0_14, %c0_15] : memref<1x512xf32, #tpu.memory_space<vmem>>, vector<1x512xf32>
    tpu.vector_store %arg4[%c0_14, %c0_15], %22 {strides = array<i32>} : memref<1x512xf32, #tpu.memory_space<vmem>>, vector<1x512xf32>,
    %24 = arith.subf %11, %9 : vector<1x512xf32>
    %cst_16 = arith.constant 5.000000e-01 : f32
    %25 = vector.broadcast %cst_16 : f32 to vector<1x512xf32>
    %26 = arith.mulf %24, %25 : vector<1x512xf32>
    %c0_17 = arith.constant 0 : index
    %c0_18 = arith.constant 0 : index
    %27 = vector.load %arg5[%c0_17, %c0_18] : memref<1x512xf32, #tpu.memory_space<vmem>>, vector<1x512xf32>
    tpu.vector_store %arg5[%c0_17, %c0_18], %26 {strides = array<i32>} : memref<1x512xf32, #tpu.memory_space<vmem>>, vector<1x512xf32>,
    return
  }
  func.func @transform_0(%arg0: i32) -> (i32, i32, i32) {
    %c0_i32 = arith.constant 0 : i32
    %c0_i32_0 = arith.constant 0 : i32
    %c0_i32_1 = arith.constant 0 : i32
    return %c0_i32, %arg0, %c0_i32_0 : i32, i32, i32
  }
  func.func @transform_1(%arg0: i32) -> (i32, i32) {
    %c0_i32 = arith.constant 0 : i32
    %c0_i32_0 = arith.constant 0 : i32
    return %arg0, %c0_i32 : i32, i32
  }
  func.func @transform_2(%arg0: i32) -> (i32, i32) {
    %c0_i32 = arith.constant 0 : i32
    %c0_i32_0 = arith.constant 0 : i32
    return %arg0, %c0_i32 : i32, i32
  }
  func.func @transform_3(%arg0: i32) -> (i32, i32) {
    %c0_i32 = arith.constant 0 : i32
    %c0_i32_0 = arith.constant 0 : i32
    return %arg0, %c0_i32 : i32, i32
  }
  func.func @transform_4(%arg0: i32) -> (i32, i32) {
    %c0_i32 = arith.constant 0 : i32
    %c0_i32_0 = arith.constant 0 : i32
    return %arg0, %c0_i32 : i32, i32
  }
}

module attributes {stable_mosaic.version = 11 : i64} {
  func.func @_haar2d_poly_kernel(%arg0: i32, %arg1: memref<4x1x512xf32, #tpu.memory_space<vmem>>, %arg2: memref<1x512xf32, #tpu.memory_space<vmem>>, %arg3: memref<1x512xf32, #tpu.memory_space<vmem>>, %arg4: memref<1x512xf32, #tpu.memory_space<vmem>>, %arg5: memref<1x512xf32, #tpu.memory_space<vmem>>) attributes {dimension_semantics = [#tpu.dimension_semantics<parallel>], iteration_bounds = array<i64: 1>, scalar_prefetch = 0 : i64, scratch_operands = 0 : i64, tpu.core_type = #tpu.core_type<tc>, window_params = [{transform_indices = @transform_0, window_bounds = array<i64: 4, 1, 512>}, {transform_indices = @transform_1, window_bounds = array<i64: 1, 512>}, {transform_indices = @transform_2, window_bounds = array<i64: 1, 512>}, {transform_indices = @transform_3, window_bounds = array<i64: 1, 512>}, {transform_indices = @transform_4, window_bounds = array<i64: 1, 512>}]} {
    %c0 = arith.constant 0 : index
    %c0_0 = arith.constant 0 : index
    %c0_1 = arith.constant 0 : index
    %0 = vector.load %arg1[%c0, %c0_0, %c0_1] : memref<4x1x512xf32, #tpu.memory_space<vmem>>, vector<1x1x512xf32>
    %1 = vector.shape_cast %0 : vector<1x1x512xf32> to vector<1x512xf32>
    %c1 = arith.constant 1 : index
    %c0_2 = arith.constant 0 : index
    %c0_3 = arith.constant 0 : index
    %2 = vector.load %arg1[%c1, %c0_2, %c0_3] : memref<4x1x512xf32, #tpu.memory_space<vmem>>, vector<1x1x512xf32>
    %3 = vector.shape_cast %2 : vector<1x1x512xf32> to vector<1x512xf32>
    %c2 = arith.constant 2 : index
    %c0_4 = arith.constant 0 : index
    %c0_5 = arith.constant 0 : index
    %4 = vector.load %arg1[%c2, %c0_4, %c0_5] : memref<4x1x512xf32, #tpu.memory_space<vmem>>, vector<1x1x512xf32>
    %5 = vector.shape_cast %4 : vector<1x1x512xf32> to vector<1x512xf32>
    %c3 = arith.constant 3 : index
    %c0_6 = arith.constant 0 : index
    %c0_7 = arith.constant 0 : index
    %6 = vector.load %arg1[%c3, %c0_6, %c0_7] : memref<4x1x512xf32, #tpu.memory_space<vmem>>, vector<1x1x512xf32>
    %7 = vector.shape_cast %6 : vector<1x1x512xf32> to vector<1x512xf32>
    %8 = arith.addf %1, %3 : vector<1x512xf32>
    %9 = arith.subf %3, %1 : vector<1x512xf32>
    %10 = arith.addf %5, %7 : vector<1x512xf32>
    %11 = arith.subf %7, %5 : vector<1x512xf32>
    %12 = arith.addf %8, %10 : vector<1x512xf32>
    %cst = arith.constant 5.000000e-01 : f32
    %13 = vector.broadcast %cst : f32 to vector<1x512xf32>
    %14 = arith.mulf %12, %13 : vector<1x512xf32>
    %c0_8 = arith.constant 0 : index
    %c0_9 = arith.constant 0 : index
    %15 = vector.load %arg2[%c0_8, %c0_9] : memref<1x512xf32, #tpu.memory_space<vmem>>, vector<1x512xf32>
    tpu.vector_store %arg2[%c0_8, %c0_9], %14 {strides = array<i32>} : memref<1x512xf32, #tpu.memory_space<vmem>>, vector<1x512xf32>,
    %16 = arith.subf %10, %8 : vector<1x512xf32>
    %cst_10 = arith.constant 5.000000e-01 : f32
    %17 = vector.broadcast %cst_10 : f32 to vector<1x512xf32>
    %18 = arith.mulf %16, %17 : vector<1x512xf32>
    %c0_11 = arith.constant 0 : index
    %c0_12 = arith.constant 0 : index
    %19 = vector.load %arg3[%c0_11, %c0_12] : memref<1x512xf32, #tpu.memory_space<vmem>>, vector<1x512xf32>
    tpu.vector_store %arg3[%c0_11, %c0_12], %18 {strides = array<i32>} : memref<1x512xf32, #tpu.memory_space<vmem>>, vector<1x512xf32>,
    %20 = arith.addf %9, %11 : vector<1x512xf32>
    %cst_13 = arith.constant 5.000000e-01 : f32
    %21 = vector.broadcast %cst_13 : f32 to vector<1x512xf32>
    %22 = arith.mulf %20, %21 : vector<1x512xf32>
    %c0_14 = arith.constant 0 : index
    %c0_15 = arith.constant 0 : index
    %23 = vector.load %arg4[%c0_14, %c0_15] : memref<1x512xf32, #tpu.memory_space<vmem>>, vector<1x512xf32>
    tpu.vector_store %arg4[%c0_14, %c0_15], %22 {strides = array<i32>} : memref<1x512xf32, #tpu.memory_space<vmem>>, vector<1x512xf32>,
    %24 = arith.subf %11, %9 : vector<1x512xf32>
    %cst_16 = arith.constant 5.000000e-01 : f32
    %25 = vector.broadcast %cst_16 : f32 to vector<1x512xf32>
    %26 = arith.mulf %24, %25 : vector<1x512xf32>
    %c0_17 = arith.constant 0 : index
    %c0_18 = arith.constant 0 : index
    %27 = vector.load %arg5[%c0_17, %c0_18] : memref<1x512xf32, #tpu.memory_space<vmem>>, vector<1x512xf32>
    tpu.vector_store %arg5[%c0_17, %c0_18], %26 {strides = array<i32>} : memref<1x512xf32, #tpu.memory_space<vmem>>, vector<1x512xf32>,
    return
  }
  func.func @transform_0(%arg0: i32) -> (i32, i32, i32) {
    %c0_i32 = arith.constant 0 : i32
    %c0_i32_0 = arith.constant 0 : i32
    %c0_i32_1 = arith.constant 0 : i32
    return %c0_i32, %arg0, %c0_i32_0 : i32, i32, i32
  }
  func.func @transform_1(%arg0: i32) -> (i32, i32) {
    %c0_i32 = arith.constant 0 : i32
    %c0_i32_0 = arith.constant 0 : i32
    return %arg0, %c0_i32 : i32, i32
  }
  func.func @transform_2(%arg0: i32) -> (i32, i32) {
    %c0_i32 = arith.constant 0 : i32
    %c0_i32_0 = arith.constant 0 : i32
    return %arg0, %c0_i32 : i32, i32
  }
  func.func @transform_3(%arg0: i32) -> (i32, i32) {
    %c0_i32 = arith.constant 0 : i32
    %c0_i32_0 = arith.constant 0 : i32
    return %arg0, %c0_i32 : i32, i32
  }
  func.func @transform_4(%arg0: i32) -> (i32, i32) {
    %c0_i32 = arith.constant 0 : i32
    %c0_i32_0 = arith.constant 0 : i32
    return %arg0, %c0_i32 : i32, i32
  }
}

</mosaic_0001>

<llo_original>
// kernel: _wavelet_haar_2d_polyphase.1
$region0: #{_wavelet_haar_2d_polyphase.1}
  #allocation0 [shape = 'u32[]', space=smem, size = 0x4, offset = 0x4, fixed_abs, tag = 'smem constant byte address 0x4 - core index']
  #allocation1 [shape = 'u32[72,128]{1,0:T(1,128)}', space=vmem, size = 0x9000, scoped, tag = 'internal scratch']
  %s0 = inlined_call_operand.vmem [shape: f32[4,1,512], index: 0, kind: input, shape index: {}]
  %s1 = inlined_call_operand.vmem [shape: f32[1,512], index: 1, kind: output, shape index: {0}]
  %s2 = inlined_call_operand.vmem [shape: f32[1,512], index: 2, kind: output, shape index: {1}]
  %s3 = inlined_call_operand.vmem [shape: f32[1,512], index: 3, kind: output, shape index: {2}]
  %s4 = inlined_call_operand.vmem [shape: f32[1,512], index: 4, kind: output, shape index: {3}]
  %5 = xla_tuple %s1, %s2, %s3, %s4
  %s6 = sld [smem:[#allocation0]]
  $region38: #{_wavelet_haar_2d_polyphase.1} parent=0
    _
  %s8 = ssub.s32 1, %s6
  %s9 = scalar_select 0, %s8, %s6
  // Predicated region
  $region2: #{_wavelet_haar_2d_polyphase.1} parent=0 // pred_check
    _
  $region3: #{_wavelet_haar_2d_polyphase.1} parent=0 // pred_check_branch
    %11 = sbr.rel (0) target = $region5
  $region4: #{_wavelet_haar_2d_polyphase.1} parent=0 // pred_region
    _
  $region5: #{_wavelet_haar_2d_polyphase.1} parent=0 // pred_fallthru
    _
  %v12 = vld [vmem:[%s0] sm:$0xf]
  %s13 = scalar_lea.vmem %s0, 4
  %v14 = vld [vmem:[%s13] sm:$0xf]
  %s15 = scalar_lea.vmem %s0, 8
  %v16 = vld [vmem:[%s15] sm:$0xf]
  %s17 = scalar_lea.vmem %s0, 12
  %v18 = vld [vmem:[%s17] sm:$0xf]
  %v19 = vadd.f32 %v12, %v14
  %v20 = vsub.f32 %v14, %v12
  %v21 = vadd.f32 %v16, %v18
  %v22 = vsub.f32 %v18, %v16
  %v23 = vadd.f32 %v19, %v21
  %v24 = vmul.f32 %v23, 0.5
  %v25 = vlaneseq
  %vm26 = vcmp.ge.s32.totalorder %v25, 0
  %vm27 = vcmp.lt.s32.totalorder %v25, 512
  %vm28 = vmand %vm26, %vm27
  %29 = vst.msk [vmem:[%s1] sm:$0xf] %vm28, %v24
  %v30 = vsub.f32 %v21, %v19
  %v31 = vmul.f32 %v30, 0.5
  %32 = vst.msk [vmem:[%s2] sm:$0xf] %vm28, %v31
  %v33 = vadd.f32 %v20, %v22
  %v34 = vmul.f32 %v33, 0.5
  %35 = vst.msk [vmem:[%s3] sm:$0xf] %vm28, %v34
  %v36 = vsub.f32 %v22, %v20
  %v37 = vmul.f32 %v36, 0.5
  %38 = vst.msk [vmem:[%s4] sm:$0xf] %vm28, %v37
  // Predicated region
  $region6: #{_wavelet_haar_2d_polyphase.1} parent=0 // pred_check
    _
  $region7: #{_wavelet_haar_2d_polyphase.1} parent=0 // pred_check_branch
    %40 = sbr.rel (0) target = $region9
  $region8: #{_wavelet_haar_2d_polyphase.1} parent=0 // pred_region
    _
  $region9: #{_wavelet_haar_2d_polyphase.1} parent=0 // pred_fallthru
    _
  // Predicated region
  $region10: #{_wavelet_haar_2d_polyphase.1} parent=0 // pred_check
    _
  $region11: #{_wavelet_haar_2d_polyphase.1} parent=0 // pred_check_branch
    %42 = sbr.rel (0) target = $region13
  $region12: #{_wavelet_haar_2d_polyphase.1} parent=0 // pred_region
    _
  $region13: #{_wavelet_haar_2d_polyphase.1} parent=0 // pred_fallthru
    _
  // Predicated region
  $region14: #{_wavelet_haar_2d_polyphase.1} parent=0 // pred_check
    _
  $region15: #{_wavelet_haar_2d_polyphase.1} parent=0 // pred_check_branch
    %44 = sbr.rel (0) target = $region17
  $region16: #{_wavelet_haar_2d_polyphase.1} parent=0 // pred_region
    _
  $region17: #{_wavelet_haar_2d_polyphase.1} parent=0 // pred_fallthru
    _
  // Predicated region
  $region18: #{_wavelet_haar_2d_polyphase.1} parent=0 // pred_check
    _
  $region19: #{_wavelet_haar_2d_polyphase.1} parent=0 // pred_check_branch
    %46 = sbr.rel (0) target = $region21
  $region20: #{_wavelet_haar_2d_polyphase.1} parent=0 // pred_region
    _
  $region21: #{_wavelet_haar_2d_polyphase.1} parent=0 // pred_fallthru
    _
  // Predicated region
  $region22: #{_wavelet_haar_2d_polyphase.1} parent=0 // pred_check
    _
  $region23: #{_wavelet_haar_2d_polyphase.1} parent=0 // pred_check_branch
    %48 = sbr.rel (0) target = $region25
  $region24: #{_wavelet_haar_2d_polyphase.1} parent=0 // pred_region
    _
  $region25: #{_wavelet_haar_2d_polyphase.1} parent=0 // pred_fallthru
    _
  // Predicated region
  $region26: #{_wavelet_haar_2d_polyphase.1} parent=0 // pred_check
    _
  $region27: #{_wavelet_haar_2d_polyphase.1} parent=0 // pred_check_branch
    %50 = sbr.rel (0) target = $region29
  $region28: #{_wavelet_haar_2d_polyphase.1} parent=0 // pred_region
    _
  $region29: #{_wavelet_haar_2d_polyphase.1} parent=0 // pred_fallthru
    _
  // Predicated region
  $region30: #{_wavelet_haar_2d_polyphase.1} parent=0 // pred_check
    _
  $region31: #{_wavelet_haar_2d_polyphase.1} parent=0 // pred_check_branch
    %52 = sbr.rel (0) target = $region33
  $region32: #{_wavelet_haar_2d_polyphase.1} parent=0 // pred_region
    _
  $region33: #{_wavelet_haar_2d_polyphase.1} parent=0 // pred_fallthru
    _
  // Predicated region
  $region34: #{_wavelet_haar_2d_polyphase.1} parent=0 // pred_check
    _
  $region35: #{_wavelet_haar_2d_polyphase.1} parent=0 // pred_check_branch
    %54 = sbr.rel (0) target = $region37
  $region36: #{_wavelet_haar_2d_polyphase.1} parent=0 // pred_region
    _
  $region37: #{_wavelet_haar_2d_polyphase.1} parent=0 // pred_fallthru
    _

// kernel: _wavelet_haar_2d_polyphase.1
$region0: #{_wavelet_haar_2d_polyphase.1}
  #allocation0 [shape = 'u32[]', space=smem, size = 0x4, offset = 0x4, fixed_abs, tag = 'smem constant byte address 0x4 - core index']
  #allocation1 [shape = 'u32[72,128]{1,0:T(1,128)}', space=vmem, size = 0x9000, scoped, tag = 'internal scratch']
  %s0 = inlined_call_operand.vmem [shape: f32[4,1,512], index: 0, kind: input, shape index: {}]
  %s1 = inlined_call_operand.vmem [shape: f32[1,512], index: 1, kind: output, shape index: {0}]
  %s2 = inlined_call_operand.vmem [shape: f32[1,512], index: 2, kind: output, shape index: {1}]
  %s3 = inlined_call_operand.vmem [shape: f32[1,512], index: 3, kind: output, shape index: {2}]
  %s4 = inlined_call_operand.vmem [shape: f32[1,512], index: 4, kind: output, shape index: {3}]
  %5 = xla_tuple %s1, %s2, %s3, %s4
  %s6 = sld [smem:[#allocation0]]
  $region38: #{_wavelet_haar_2d_polyphase.1} parent=0
    _
  %s8 = ssub.s32 1, %s6
  %s9 = scalar_select 0, %s8, %s6
  // Predicated region
  $region2: #{_wavelet_haar_2d_polyphase.1} parent=0 // pred_check
    _
  $region3: #{_wavelet_haar_2d_polyphase.1} parent=0 // pred_check_branch
    %11 = sbr.rel (0) target = $region5
  $region4: #{_wavelet_haar_2d_polyphase.1} parent=0 // pred_region
    _
  $region5: #{_wavelet_haar_2d_polyphase.1} parent=0 // pred_fallthru
    _
  %v12 = vld [vmem:[%s0] sm:$0xf]
  %s13 = scalar_lea.vmem %s0, 4
  %v14 = vld [vmem:[%s13] sm:$0xf]
  %s15 = scalar_lea.vmem %s0, 8
  %v16 = vld [vmem:[%s15] sm:$0xf]
  %s17 = scalar_lea.vmem %s0, 12
  %v18 = vld [vmem:[%s17] sm:$0xf]
  %v19 = vadd.f32 %v12, %v14
  %v20 = vsub.f32 %v14, %v12
  %v21 = vadd.f32 %v16, %v18
  %v22 = vsub.f32 %v18, %v16
  %v23 = vadd.f32 %v19, %v21
  %v24 = vmul.f32 %v23, 0.5
  %v25 = vlaneseq
  %vm26 = vcmp.ge.s32.totalorder %v25, 0
  %vm27 = vcmp.lt.s32.totalorder %v25, 512
  %vm28 = vmand %vm26, %vm27
  %29 = vst.msk [vmem:[%s1] sm:$0xf] %vm28, %v24
  %v30 = vsub.f32 %v21, %v19
  %v31 = vmul.f32 %v30, 0.5
  %32 = vst.msk [vmem:[%s2] sm:$0xf] %vm28, %v31
  %v33 = vadd.f32 %v20, %v22
  %v34 = vmul.f32 %v33, 0.5
  %35 = vst.msk [vmem:[%s3] sm:$0xf] %vm28, %v34
  %v36 = vsub.f32 %v22, %v20
  %v37 = vmul.f32 %v36, 0.5
  %38 = vst.msk [vmem:[%s4] sm:$0xf] %vm28, %v37
  // Predicated region
  $region6: #{_wavelet_haar_2d_polyphase.1} parent=0 // pred_check
    _
  $region7: #{_wavelet_haar_2d_polyphase.1} parent=0 // pred_check_branch
    %40 = sbr.rel (0) target = $region9
  $region8: #{_wavelet_haar_2d_polyphase.1} parent=0 // pred_region
    _
  $region9: #{_wavelet_haar_2d_polyphase.1} parent=0 // pred_fallthru
    _
  // Predicated region
  $region10: #{_wavelet_haar_2d_polyphase.1} parent=0 // pred_check
    _
  $region11: #{_wavelet_haar_2d_polyphase.1} parent=0 // pred_check_branch
    %42 = sbr.rel (0) target = $region13
  $region12: #{_wavelet_haar_2d_polyphase.1} parent=0 // pred_region
    _
  $region13: #{_wavelet_haar_2d_polyphase.1} parent=0 // pred_fallthru
    _
  // Predicated region
  $region14: #{_wavelet_haar_2d_polyphase.1} parent=0 // pred_check
    _
  $region15: #{_wavelet_haar_2d_polyphase.1} parent=0 // pred_check_branch
    %44 = sbr.rel (0) target = $region17
  $region16: #{_wavelet_haar_2d_polyphase.1} parent=0 // pred_region
    _
  $region17: #{_wavelet_haar_2d_polyphase.1} parent=0 // pred_fallthru
    _
  // Predicated region
  $region18: #{_wavelet_haar_2d_polyphase.1} parent=0 // pred_check
    _
  $region19: #{_wavelet_haar_2d_polyphase.1} parent=0 // pred_check_branch
    %46 = sbr.rel (0) target = $region21
  $region20: #{_wavelet_haar_2d_polyphase.1} parent=0 // pred_region
    _
  $region21: #{_wavelet_haar_2d_polyphase.1} parent=0 // pred_fallthru
    _
  // Predicated region
  $region22: #{_wavelet_haar_2d_polyphase.1} parent=0 // pred_check
    _
  $region23: #{_wavelet_haar_2d_polyphase.1} parent=0 // pred_check_branch
    %48 = sbr.rel (0) target = $region25
  $region24: #{_wavelet_haar_2d_polyphase.1} parent=0 // pred_region
    _
  $region25: #{_wavelet_haar_2d_polyphase.1} parent=0 // pred_fallthru
    _
  // Predicated region
  $region26: #{_wavelet_haar_2d_polyphase.1} parent=0 // pred_check
    _
  $region27: #{_wavelet_haar_2d_polyphase.1} parent=0 // pred_check_branch
    %50 = sbr.rel (0) target = $region29
  $region28: #{_wavelet_haar_2d_polyphase.1} parent=0 // pred_region
    _
  $region29: #{_wavelet_haar_2d_polyphase.1} parent=0 // pred_fallthru
    _
  // Predicated region
  $region30: #{_wavelet_haar_2d_polyphase.1} parent=0 // pred_check
    _
  $region31: #{_wavelet_haar_2d_polyphase.1} parent=0 // pred_check_branch
    %52 = sbr.rel (0) target = $region33
  $region32: #{_wavelet_haar_2d_polyphase.1} parent=0 // pred_region
    _
  $region33: #{_wavelet_haar_2d_polyphase.1} parent=0 // pred_fallthru
    _
  // Predicated region
  $region34: #{_wavelet_haar_2d_polyphase.1} parent=0 // pred_check
    _
  $region35: #{_wavelet_haar_2d_polyphase.1} parent=0 // pred_check_branch
    %54 = sbr.rel (0) target = $region37
  $region36: #{_wavelet_haar_2d_polyphase.1} parent=0 // pred_region
    _
  $region37: #{_wavelet_haar_2d_polyphase.1} parent=0 // pred_fallthru
    _

</llo_original>
